<compile_context>
chip_gen: v7x
topology: tpu7x:2x2x1
jax: 0.10.0
libtpu: 0.0.40
codegen_flags: <defaults>
</compile_context>

<pallas_src>
import functools
import math

import jax
import jax.numpy as jnp
from jax import lax
from jax.experimental import pallas as pl
from jax.experimental.pallas import tpu as pltpu

LANE = 128            # lane padding target for narrow feature dims
NEG = -9e15           # masked-attention sentinel (matches the torch reference)
_MM = jnp.bfloat16    # MXU input dtype


def _round_up(x, m):
    return ((x + m - 1) // m) * m


def _pad_rows(a, rows):
    return jnp.pad(a, ((0, rows - a.shape[0]), (0, 0)))


def _pad_cols(a, cols):
    return jnp.pad(a, ((0, 0), (0, cols - a.shape[1])))


# ----------------------------------------------------------------------------
# Hardware-aware knobs (generation-gated tiles, VMEM limit, weight buffering)
# ----------------------------------------------------------------------------
@functools.lru_cache(maxsize=None)
def _vmem_limit_bytes():
    """~half of physical VMEM (32 MiB on v7x, 64 MiB on v5e/v6e), clamped."""
    try:
        cap = int(pltpu.get_tpu_info().vmem_capacity_bytes)
        return int(min(max(cap // 2, 32 * 1024 * 1024), 96 * 1024 * 1024))
    except Exception:
        return 48 * 1024 * 1024


@functools.lru_cache(maxsize=None)
def _mxu_tile():
    """Preferred contraction tile: 256 on v6e/v7x (256-wide MXU), 128 before."""
    try:
        kind = jax.devices()[0].device_kind.lower()
    except Exception:
        return 256
    if any(t in kind for t in ("v2", "v3", "v4", "v5")):
        return 128
    return 256


def _pick_tiles(n):
    """Row tile TM, kv tile TK and padded node count for a graph of n nodes."""
    pref = _mxu_tile()
    if pref >= 256 and n >= 256:
        np_nodes = _round_up(n, 256)
        tk = 256
        # keep >= 2 row tiles so the "parallel" row axis can feed both v7x TCs
        tm = 256 if np_nodes >= 512 else 128
    else:
        np_nodes = _round_up(n, 128)
        tm = tk = 128
    return tm, tk, np_nodes


def _cp(sem):
    return pltpu.CompilerParams(dimension_semantics=sem,
                                vmem_limit_bytes=_vmem_limit_bytes())


@functools.lru_cache(maxsize=None)
def _weight_pipeline():
    """Return pl.Buffered(1) if this JAX build supports single-buffered
    constant-index blocks (saves ~half the resident-weight VMEM), else None."""
    try:
        mode = pl.Buffered(1)

        def _probe_kernel(a_ref, b_ref, o_ref):
            o_ref[...] = a_ref[...] + b_ref[...]

        f = pl.pallas_call(
            _probe_kernel,
            out_shape=jax.ShapeDtypeStruct((8, 128), jnp.float32),
            grid=(2,),
            in_specs=[pl.BlockSpec((8, 128), lambda i: (0, 0),
                                   pipeline_mode=mode),
                      pl.BlockSpec((8, 128), lambda i: (0, 0))],
            out_specs=pl.BlockSpec((8, 128), lambda i: (0, 0)),
        )
        jax.block_until_ready(f(jnp.zeros((8, 128), jnp.float32),
                                jnp.ones((8, 128), jnp.float32)))
        return mode
    except Exception:
        return None


def _spec_full(shape):
    """Whole (small) array resident with constant index map; single-buffered
    when supported."""
    idx = lambda *g: (0,) * len(shape)
    mode = _weight_pipeline()
    if mode is not None:
        return pl.BlockSpec(shape, idx, pipeline_mode=mode)
    return pl.BlockSpec(shape, idx)


# ----------------------------------------------------------------------------
# In-kernel math helpers
# ----------------------------------------------------------------------------
def _dotf(a, b):
    """bf16 x bf16 MXU matmul with f32 accumulation."""
    return jnp.dot(a.astype(_MM), b.astype(_MM),
                   preferred_element_type=jnp.float32)


def _dot_nt(a, b):
    """a @ b.T (contract last dims) in bf16 with f32 accumulation."""
    return lax.dot_general(a.astype(_MM), b.astype(_MM),
                           (((1,), (1,)), ((), ())),
                           preferred_element_type=jnp.float32)


def _student_t(z, mu, v):
    """Row-normalised student-t soft assignment q (z: (TM,E) f32, mu: (K,E))."""
    z2 = jnp.sum(z * z, axis=1, keepdims=True)                        # (TM,1)
    ones = jnp.ones((1, mu.shape[1]), jnp.float32)
    m2 = lax.dot_general(ones, mu * mu, (((1,), (1,)), ((), ())),
                         preferred_element_type=jnp.float32)          # (1,K)
    cross = lax.dot_general(z, mu, (((1,), (1,)), ((), ())),
                            preferred_element_type=jnp.float32)       # (TM,K)
    dist = jnp.maximum(z2 + m2 - 2.0 * cross, 0.0)
    q = 1.0 / (1.0 + dist / v)
    expo = (v + 1.0) / 2.0
    if expo != 1.0:
        q = jnp.exp(expo * jnp.log(q))            # q > 0, exact pow
    # exact division in the final normalization (feeds the KL loss)
    return q / jnp.sum(q, axis=1, keepdims=True)


# ----------------------------------------------------------------------------
# Kernels
# ----------------------------------------------------------------------------
def _ae_kernel(v, x_ref,
               w1, b1, w2, b2, w3, b3, wz, bz,
               wd1, bd1, wd2, bd2, wd3, bd3, wx, bx,
               mu_ref,
               xbar_ref, t1_ref, t2_ref, t3_ref, h_ref, q_ref):
    """Fused AE encoder + decoder + student-t q_h for one row tile."""
    x = x_ref[...]
    t1 = jnp.maximum(_dotf(x, w1[...]) + b1[...], 0.0)
    t2 = jnp.maximum(_dotf(t1, w2[...]) + b2[...], 0.0)
    t3 = jnp.maximum(_dotf(t2, w3[...]) + b3[...], 0.0)
    h = _dotf(t3, wz[...]) + bz[...]
    d1 = jnp.maximum(_dotf(h, wd1[...]) + bd1[...], 0.0)
    d2 = jnp.maximum(_dotf(d1, wd2[...]) + bd2[...], 0.0)
    d3 = jnp.maximum(_dotf(d2, wd3[...]) + bd3[...], 0.0)
    xbar_ref[...] = _dotf(d3, wx[...]) + bx[...]
    # intermediates stored bf16 (their consumers feed the MXU in bf16 anyway)
    t1_ref[...] = t1.astype(t1_ref.dtype)
    t2_ref[...] = t2.astype(t2_ref.dtype)
    t3_ref[...] = t3.astype(t3_ref.dtype)
    h_ref[...] = h.astype(h_ref.dtype)
    q_ref[...] = _student_t(h, mu_ref[...], v)      # q from f32 h (accuracy)


def _gat_proj_kernel(x_ref, w_ref, a_nbr_ref, h_ref, en_ref):
    """h = x @ W (bf16 out) plus the per-node neighbour attention scalar."""
    h = _dotf(x_ref[...], w_ref[...])
    h_ref[...] = h.astype(h_ref.dtype)
    en_ref[...] = jnp.sum(h * a_nbr_ref[...], axis=1, keepdims=True)


def _gat_attn_kernel(alpha, apply_elu, nbk,
                     flags_ref,
                     en_ref, adj_ref, m_ref, hq_ref, hkv_ref, a_self_ref,
                     out_ref,
                     es_sc, m_sc, l_sc, acc_sc):
    """Flash-style masked GAT attention over (row tile, kv tile) with
    tile-level sparsity skipping (all-zero adjacency tiles contribute exactly
    zero probability after the exp underflow, so skipping them is exact)."""
    i = pl.program_id(0)
    k = pl.program_id(1)

    @pl.when(k == 0)
    def _():
        # es folded in here: one VPU lane-reduce per row tile (no lane-sparse
        # (Np,1) store / reload for the self term).
        es_sc[...] = jnp.sum(hq_ref[...].astype(jnp.float32) * a_self_ref[...],
                             axis=1, keepdims=True)
        m_sc[...] = jnp.full_like(m_sc, NEG)
        l_sc[...] = jnp.zeros_like(l_sc)
        acc_sc[...] = jnp.zeros_like(acc_sc)

    @pl.when(flags_ref[i * nbk + k] != 0)
    def _():
        dense = (es_sc[...] + en_ref[...]) * m_ref[...]
        dense = jnp.where(dense > 0, dense, alpha * dense)      # LeakyReLU
        s = jnp.where(adj_ref[...].astype(jnp.float32) > 0.0, dense, NEG)
        m_new = jnp.maximum(m_sc[...], jnp.max(s, axis=1, keepdims=True))
        a = jnp.exp(m_sc[...] - m_new)                          # rescale
        p = jnp.exp(s - m_new)
        l_sc[...] = a * l_sc[...] + jnp.sum(p, axis=1, keepdims=True)
        acc_sc[...] = a * acc_sc[...] + _dotf(p, hkv_ref[...])
        m_sc[...] = m_new

    @pl.when(k == pl.num_programs(1) - 1)
    def _():
        l = l_sc[...]
        inv = 1.0 / jnp.maximum(l, 1e-30)        # exact, final normalization
        # rows whose every tile was skipped (fully isolated / all-padding rows)
        # are emitted as zeros instead of NaN.
        hp = jnp.where(l > 0.0, acc_sc[...] * inv, 0.0)
        if apply_elu:
            # exp only on the clamped (<=0) branch -> no inf in dead branch
            hp = jnp.where(hp > 0, hp, jnp.exp(jnp.minimum(hp, 0.0)) - 1.0)
        out_ref[...] = hp.astype(out_ref.dtype)


def _norm_q_kernel(v, r_ref, mu_ref, zn_ref, q_ref):
    """F.normalize(r) and student-t q_r for one row tile."""
    r = r_ref[...].astype(jnp.float32)
    inv = lax.rsqrt(jnp.maximum(jnp.sum(r * r, axis=1, keepdims=True), 1e-24))
    zn = r * inv
    zn_ref[...] = zn.astype(zn_ref.dtype)
    q_ref[...] = _student_t(zn, mu_ref[...], v)


def _gram_kernel(zi_ref, zj_ref, a_ref):
    """A_pred tile: sigmoid(z_i @ z_j^T).
    TODO(synk): exploit symmetry (upper-triangular only) and/or bf16 output if
    the downstream loss tolerates it; kept full f32 to match the torch return."""
    a_ref[...] = jax.nn.sigmoid(_dot_nt(zi_ref[...], zj_ref[...]))


def _xw_kernel(x_ref, w_ref, s_ref):
    s_ref[...] = _dotf(x_ref[...], w_ref[...]).astype(s_ref.dtype)


def _fafgc_support_kernel(h_ref, z_ref, awh_ref, awz_ref, w_ref, s_ref):
    """Feature-attention fusion of (h, z) + projection for one row tile.
    The 2-column attention logits are VPU lane reductions (aw stored as
    (2, Fin)) with a manual 2-way softmax -- no skinny f32 MXU dots."""
    h = h_ref[...]
    z = z_ref[...]
    l0 = (jnp.sum(h * awh_ref[0:1, :], axis=1, keepdims=True)
          + jnp.sum(z * awz_ref[0:1, :], axis=1, keepdims=True))
    l1 = (jnp.sum(h * awh_ref[1:2, :], axis=1, keepdims=True)
          + jnp.sum(z * awz_ref[1:2, :], axis=1, keepdims=True))
    t0 = jnp.tanh(l0)
    t1 = jnp.tanh(l1)
    mx = jnp.maximum(t0, t1)
    e0 = jnp.exp(t0 - mx)
    e1 = jnp.exp(t1 - mx)
    inv = 1.0 / (e0 + e1)
    fused = (e0 * inv) * h + (e1 * inv) * z
    s_ref[...] = _dotf(fused, w_ref[...]).astype(s_ref.dtype)


def _sfgc_support_kernel(z1_ref, z2_ref, z3_ref, z4_ref, h_ref,
                         a1, a2, a3, a4, a5, w1, w2, w3, w4, w5, s_ref):
    """5-way scale-attention fusion + weighted projection (bf16 MXU inputs)."""
    feats = [z1_ref[...], z2_ref[...], z3_ref[...], z4_ref[...], h_ref[...]]
    aws = [a1[...], a2[...], a3[...], a4[...], a5[...]]
    ws = [w1[...], w2[...], w3[...], w4[...], w5[...]]
    logits = _dotf(feats[0], aws[0])
    for f, a in zip(feats[1:], aws[1:]):
        logits = logits + _dotf(f, a)
    m = jax.nn.softmax(jnp.tanh(logits), axis=1)
    s = _dotf(m[:, 0:1] * feats[0], ws[0])
    for idx in range(1, 5):
        s = s + _dotf(m[:, idx:idx + 1] * feats[idx], ws[idx])
    s_ref[...] = s.astype(s_ref.dtype)


def _spmm_kernel(apply_relu, nbk, flags_ref, adj_ref, s_ref, o_ref):
    """out = (relu)(adj_norm @ support); accumulates directly into the
    resident f32 output block (no scratch) and skips all-zero adjacency tiles."""
    i = pl.program_id(0)
    k = pl.program_id(1)

    @pl.when(k == 0)
    def _():
        o_ref[...] = jnp.zeros_like(o_ref)

    @pl.when(flags_ref[i * nbk + k] != 0)
    def _():
        o_ref[...] += _dotf(adj_ref[...], s_ref[...])

    if apply_relu:
        @pl.when(k == pl.num_programs(1) - 1)
        def _():
            o_ref[...] = jnp.maximum(o_ref[...], 0.0)


def _spmm_softmax_kernel(nbk, flags_ref, adj_ref, s_ref, z_ref, p_ref):
    """SFGC graph conv + fused row softmax (predict); accumulates into z_ref."""
    i = pl.program_id(0)
    k = pl.program_id(1)

    @pl.when(k == 0)
    def _():
        z_ref[...] = jnp.zeros_like(z_ref)

    @pl.when(flags_ref[i * nbk + k] != 0)
    def _():
        z_ref[...] += _dotf(adj_ref[...], s_ref[...])

    @pl.when(k == pl.num_programs(1) - 1)
    def _():
        z = z_ref[...]
        e = jnp.exp(z - jnp.max(z, axis=1, keepdims=True))
        p_ref[...] = e / jnp.sum(e, axis=1, keepdims=True)   # exact softmax


# ----------------------------------------------------------------------------
# pallas_call wrappers
# ----------------------------------------------------------------------------
def ae_forward(params, x_pad, v, tm):
    Np, D = x_pad.shape
    layers = [params[k] for k in
              ("enc1", "enc2", "enc3", "z", "dec1", "dec2", "dec3", "xbar")]
    flat = []
    for lp in layers:
        flat += [lp["w"], lp["b"]]
    mu = params["cluster_h"]
    d1 = params["enc1"]["w"].shape[1]
    d2 = params["enc2"]["w"].shape[1]
    d3 = params["enc3"]["w"].shape[1]
    ep = params["z"]["w"].shape[1]
    K = mu.shape[0]

    def row(cols):
        return pl.BlockSpec((tm, cols), lambda i: (i, 0))

    out_shape = (jax.ShapeDtypeStruct((Np, D), jnp.float32),
                 jax.ShapeDtypeStruct((Np, d1), jnp.bfloat16),
                 jax.ShapeDtypeStruct((Np, d2), jnp.bfloat16),
                 jax.ShapeDtypeStruct((Np, d3), jnp.bfloat16),
                 jax.ShapeDtypeStruct((Np, ep), jnp.bfloat16),
                 jax.ShapeDtypeStruct((Np, K), jnp.float32))
    in_specs = ([row(D)] + [_spec_full(a.shape) for a in flat]
                + [_spec_full(mu.shape)])
    out_specs = (row(D), row(d1), row(d2), row(d3), row(ep), row(K))
    return pl.pallas_call(
        functools.partial(_ae_kernel, v),
        out_shape=out_shape,
        grid=(Np // tm,),
        in_specs=in_specs,
        out_specs=out_specs,
        compiler_params=_cp(("parallel",)),
    )(x_pad, *flat, mu)


def gat_layer(x, w, a_self, a_nbr, adj_i8, m_p, adj_flags, alpha, apply_elu,
              tm, tk):
    Np, Fin = x.shape
    Fout = w.shape[1]
    nbi, nbk = Np // tm, Np // tk

    h, en = pl.pallas_call(
        _gat_proj_kernel,
        out_shape=(jax.ShapeDtypeStruct((Np, Fout), jnp.bfloat16),
                   jax.ShapeDtypeStruct((Np, 1), jnp.float32)),
        grid=(Np // tm,),
        in_specs=[pl.BlockSpec((tm, Fin), lambda i: (i, 0)),
                  _spec_full(w.shape),
                  _spec_full(a_nbr.shape)],
        out_specs=(pl.BlockSpec((tm, Fout), lambda i: (i, 0)),
                   pl.BlockSpec((tm, 1), lambda i: (i, 0))),
        compiler_params=_cp(("parallel",)),
    )(x, w, a_nbr)

    # (Np,1) -> (1,Np): contiguous reshape; the per-kv-step (1,TK) slice DMA is
    # tiny (<=1KB) and fully pipelined.
    en_row = en.reshape(1, Np)

    gs = pltpu.PrefetchScalarGridSpec(
        num_scalar_prefetch=1,
        grid=(nbi, nbk),
        in_specs=[pl.BlockSpec((1, tk), lambda i, k, f: (0, k)),       # en
                  pl.BlockSpec((tm, tk), lambda i, k, f: (i, k)),      # adj i8
                  pl.BlockSpec((tm, tk), lambda i, k, f: (i, k)),      # M bf16
                  pl.BlockSpec((tm, Fout), lambda i, k, f: (i, 0)),    # h_q
                  pl.BlockSpec((tk, Fout), lambda i, k, f: (k, 0)),    # h_kv
                  _spec_full(a_self.shape)],
        out_specs=pl.BlockSpec((tm, Fout), lambda i, k, f: (i, 0)),
        scratch_shapes=[pltpu.VMEM((tm, 1), jnp.float32),   # es
                        pltpu.VMEM((tm, 1), jnp.float32),   # running max
                        pltpu.VMEM((tm, 1), jnp.float32),   # running sum
                        pltpu.VMEM((tm, Fout), jnp.float32)])
    return pl.pallas_call(
        functools.partial(_gat_attn_kernel, alpha, apply_elu, nbk),
        out_shape=jax.ShapeDtypeStruct((Np, Fout), jnp.bfloat16),
        grid_spec=gs,
        compiler_params=_cp(("parallel", "arbitrary")),
    )(adj_flags, en_row, adj_i8, m_p, h, h, a_self)


def norm_and_q(r, mu, v, tm):
    Np, Ep = r.shape
    K = mu.shape[0]
    return pl.pallas_call(
        functools.partial(_norm_q_kernel, v),
        out_shape=(jax.ShapeDtypeStruct((Np, Ep), jnp.bfloat16),
                   jax.ShapeDtypeStruct((Np, K), jnp.float32)),
        grid=(Np // tm,),
        in_specs=[pl.BlockSpec((tm, Ep), lambda i: (i, 0)),
                  _spec_full(mu.shape)],
        out_specs=(pl.BlockSpec((tm, Ep), lambda i: (i, 0)),
                   pl.BlockSpec((tm, K), lambda i: (i, 0))),
        compiler_params=_cp(("parallel",)),
    )(r, mu)


def a_pred_decode(zn, tm):
    Np, Ep = zn.shape
    return pl.pallas_call(
        _gram_kernel,
        out_shape=jax.ShapeDtypeStruct((Np, Np), jnp.float32),
        grid=(Np // tm, Np // tm),
        in_specs=[pl.BlockSpec((tm, Ep), lambda i, j: (i, 0)),
                  pl.BlockSpec((tm, Ep), lambda i, j: (j, 0))],
        out_specs=pl.BlockSpec((tm, tm), lambda i, j: (i, j)),
        compiler_params=_cp(("parallel", "parallel")),
    )(zn, zn)


def dense_xw(x, w, tm):
    Np = x.shape[0]
    return pl.pallas_call(
        _xw_kernel,
        out_shape=jax.ShapeDtypeStruct((Np, w.shape[1]), jnp.bfloat16),
        grid=(Np // tm,),
        in_specs=[pl.BlockSpec((tm, x.shape[1]), lambda i: (i, 0)),
                  _spec_full(w.shape)],
        out_specs=pl.BlockSpec((tm, w.shape[1]), lambda i: (i, 0)),
        compiler_params=_cp(("parallel",)),
    )(x, w)


def fafgc_support(h, z, awh, awz, w, tm):
    Np, Fin = h.shape
    Fout = w.shape[1]
    return pl.pallas_call(
        _fafgc_support_kernel,
        out_shape=jax.ShapeDtypeStruct((Np, Fout), jnp.bfloat16),
        grid=(Np // tm,),
        in_specs=[pl.BlockSpec((tm, Fin), lambda i: (i, 0)),
                  pl.BlockSpec((tm, Fin), lambda i: (i, 0)),
                  _spec_full(awh.shape), _spec_full(awz.shape),
                  _spec_full(w.shape)],
        out_specs=pl.BlockSpec((tm, Fout), lambda i: (i, 0)),
        compiler_params=_cp(("parallel",)),
    )(h, z, awh, awz, w)


def sfgc_support(feats, aws, ws, tm):
    Np = feats[0].shape[0]
    Fout = ws[0].shape[1]
    in_specs = ([pl.BlockSpec((tm, f.shape[1]), lambda i: (i, 0))
                 for f in feats]
                + [_spec_full(a.shape) for a in aws]
                + [_spec_full(w.shape) for w in ws])
    return pl.pallas_call(
        _sfgc_support_kernel,
        out_shape=jax.ShapeDtypeStruct((Np, Fout), jnp.bfloat16),
        grid=(Np // tm,),
        in_specs=in_specs,
        out_specs=pl.BlockSpec((tm, Fout), lambda i: (i, 0)),
        compiler_params=_cp(("parallel",)),
    )(*feats, *aws, *ws)


def spmm(adjn_p, support, flags, relu, tm, tk):
    Np = adjn_p.shape[0]
    F = support.shape[1]
    nbi, nbk = Np // tm, Np // tk
    gs = pltpu.PrefetchScalarGridSpec(
        num_scalar_prefetch=1,
        grid=(nbi, nbk),
        in_specs=[pl.BlockSpec((tm, tk), lambda i, k, f: (i, k)),
                  pl.BlockSpec((tk, F), lambda i, k, f: (k, 0))],
        out_specs=pl.BlockSpec((tm, F), lambda i, k, f: (i, 0)))
    return pl.pallas_call(
        functools.partial(_spmm_kernel, relu, nbk),
        out_shape=jax.ShapeDtypeStruct((Np, F), jnp.float32),
        grid_spec=gs,
        compiler_params=_cp(("parallel", "arbitrary")),
    )(flags, adjn_p, support)


def sfgc_spmm_softmax(adjn_p, support, flags, tm, tk):
    Np = adjn_p.shape[0]
    F = support.shape[1]
    nbi, nbk = Np // tm, Np // tk
    gs = pltpu.PrefetchScalarGridSpec(
        num_scalar_prefetch=1,
        grid=(nbi, nbk),
        in_specs=[pl.BlockSpec((tm, tk), lambda i, k, f: (i, k)),
                  pl.BlockSpec((tk, F), lambda i, k, f: (k, 0))],
        out_specs=(pl.BlockSpec((tm, F), lambda i, k, f: (i, 0)),
                   pl.BlockSpec((tm, F), lambda i, k, f: (i, 0))))
    return pl.pallas_call(
        functools.partial(_spmm_softmax_kernel, nbk),
        out_shape=(jax.ShapeDtypeStruct((Np, F), jnp.float32),
                   jax.ShapeDtypeStruct((Np, F), jnp.float32)),
        grid_spec=gs,
        compiler_params=_cp(("parallel", "arbitrary")),
    )(flags, adjn_p, support)


# ----------------------------------------------------------------------------
# Parameters (deterministic xavier-normal-style init; big weights in bf16,
# narrow dims zero-padded to 128 lanes -- mathematically exact)
# ----------------------------------------------------------------------------
def _xavier(key, shape):
    std = math.sqrt(2.0 / (shape[0] + shape[1]))
    return (std * jax.random.normal(key, shape)).astype(jnp.float32)


def init_params(key, input_dim, output_dim, embedding_dim):
    EP = _round_up(embedding_dim, LANE)     # lane-padded embedding width
    Z4P = _round_up(10, LANE)               # lane-padded width of z4
    keys = iter(jax.random.split(key, 64))
    nk = lambda: next(keys)

    def lin(i, o, pad_out=None, pad_in=None):
        w = _xavier(nk(), (i, o))
        b = jnp.zeros((1, o), jnp.float32)
        if pad_out is not None:
            w = _pad_cols(w, pad_out)
            b = _pad_cols(b, pad_out)
        if pad_in is not None:
            w = _pad_rows(w, pad_in)
        return {"w": w.astype(jnp.bfloat16), "b": b}

    p = {}
    # AE: enc 500-500-2000 -> z(E) -> dec 2000-500-500 -> x_bar
    p["enc1"] = lin(input_dim, 500)
    p["enc2"] = lin(500, 500)
    p["enc3"] = lin(500, 2000)
    p["z"] = lin(2000, embedding_dim, pad_out=EP)
    p["dec1"] = lin(embedding_dim, 2000, pad_in=EP)
    p["dec2"] = lin(2000, 500)
    p["dec3"] = lin(500, 500)
    p["xbar"] = lin(500, input_dim)

    # GAT: input -> 500 -> 500 -> 2000 -> embedding_dim
    gat_dims = [(input_dim, 500), (500, 500), (500, 2000),
                (2000, embedding_dim)]
    p["gat"] = []
    for li, (i, o) in enumerate(gat_dims):
        op = EP if li == len(gat_dims) - 1 else o
        w = _xavier(nk(), (i, o))
        a_s = _xavier(nk(), (1, o))
        a_n = _xavier(nk(), (1, o))
        if op != o:
            w = _pad_cols(w, op)
            a_s = _pad_cols(a_s, op)
            a_n = _pad_cols(a_n, op)
        p["gat"].append({"w": w.astype(jnp.bfloat16),
                         "a_self": a_s, "a_nbr": a_n})

    # GCN1 + FAFGC stack
    p["gcn1_w"] = _xavier(nk(), (input_dim, 500)).astype(jnp.bfloat16)

    def fafgc(i, o, pad_out=None):
        w = _xavier(nk(), (i, o))
        if pad_out is not None:
            w = _pad_cols(w, pad_out)
        # feature-attention rows stored transposed (2, Fin) so the kernel can
        # use per-column VPU lane reductions instead of skinny f32 MXU dots.
        return {"aw_h": _xavier(nk(), (2, i)),
                "aw_z": _xavier(nk(), (2, i)),
                "w": w.astype(jnp.bfloat16)}

    p["gcn2"] = fafgc(500, 500)
    p["gcn3"] = fafgc(500, 2000)
    p["gcn4"] = fafgc(2000, 10, pad_out=Z4P)

    # SFGC: dims of (z1, z2, z3, z4, h) -> output_dim
    true_dims = [500, 500, 2000, 10, embedding_dim]
    pad_dims = [500, 500, 2000, Z4P, EP]
    p["sf_aw"], p["sf_w"] = [], []
    for td, pd in zip(true_dims, pad_dims):
        aw = _xavier(nk(), (td, 5))
        w = _xavier(nk(), (td, output_dim))
        if pd != td:
            aw = _pad_rows(aw, pd)
            w = _pad_rows(w, pd)
        p["sf_aw"].append(aw.astype(jnp.bfloat16))
        p["sf_w"].append(w.astype(jnp.bfloat16))

    # cluster layers (kept f32; embedding dim zero-padded -> distances exact)
    p["cluster_r"] = _pad_cols(_xavier(nk(), (output_dim, embedding_dim)), EP)
    p["cluster_h"] = _pad_cols(_xavier(nk(), (output_dim, embedding_dim)), EP)
    return p


# ----------------------------------------------------------------------------
# GCSEE forward
# ----------------------------------------------------------------------------
def gcsee_forward(params, x, adj, adj_norm, M, v=1.0, alpha=0.2):
    n = x.shape[0]
    tm, tk, Np = _pick_tiles(n)
    pad = Np - n

    # zero-pad the node dimension: padded nodes have no edges, so they never
    # contaminate real rows (all mixing goes through adjacency matmuls).
    x_p = jnp.pad(x, ((0, pad), (0, 0)))
    adj_i8 = (jnp.pad(adj, ((0, pad), (0, pad))) != 0).astype(jnp.int8)
    adjn_p = jnp.pad(adj_norm, ((0, pad), (0, pad))).astype(jnp.bfloat16)
    m_p = jnp.pad(M, ((0, pad), (0, pad))).astype(jnp.bfloat16)

    nbi, nbk = Np // tm, Np // tk

    def tile_flags(a):
        blk = (a.reshape(nbi, tm, nbk, tk) != 0).any(axis=(1, 3))
        return blk.reshape(-1).astype(jnp.int32)

    adj_flags = tile_flags(adj_i8)       # GAT attention sparsity
    adjn_flags = tile_flags(adjn_p)      # graph-conv sparsity

    # ---- GAT branch: flash attention layers -> normalize -> A_pred, q_r ----
    h = x_p
    gat = params["gat"]
    for li, lp in enumerate(gat):
        h = gat_layer(h, lp["w"], lp["a_self"], lp["a_nbr"], adj_i8, m_p,
                      adj_flags, alpha, apply_elu=(li < len(gat) - 1),
                      tm=tm, tk=tk)
    zn, q_r = norm_and_q(h, params["cluster_r"], v, tm)
    A_pred = a_pred_decode(zn, tm)

    # ---- AE branch (fused 8-layer MLP + q_h; fixed 128-row tiles to keep the
    # resident-weight + activation VMEM footprint small on v7x) ----
    x_bar, tra1, tra2, tra3, h_ae, q_h = ae_forward(params, x_p, v, 128)

    # ---- GCN / FAFGC stack: support kernels + sparsity-skipped spmm ----
    s1 = dense_xw(x_p, params["gcn1_w"], tm)
    z1 = spmm(adjn_p, s1, adjn_flags, True, tm, tk)

    def fafgc_layer(pp, hh, zz):
        s = fafgc_support(hh, zz, pp["aw_h"], pp["aw_z"], pp["w"], tm)
        return spmm(adjn_p, s, adjn_flags, True, tm, tk)

    z2 = fafgc_layer(params["gcn2"], tra1, z1)
    z3 = fafgc_layer(params["gcn3"], tra2, z2)
    z4 = fafgc_layer(params["gcn4"], tra3, z3)

    # ---- scale fusion + classifier head (softmax fused into the spmm) ----
    ss = sfgc_support([z1, z2, z3, z4, h_ae], params["sf_aw"], params["sf_w"],
                      tm)
    z, predict = sfgc_spmm_softmax(adjn_p, ss, adjn_flags, tm, tk)

    # strip the node padding
    return (x_bar[:n], A_pred[:n, :n], predict[:n],
            q_r[:n], q_h[:n], z[:n])


# ----------------------------------------------------------------------------
if __name__ == "__main__":
    N, input_dim, embedding_dim, output_dim = 16, 32, 10, 4

    key = jax.random.PRNGKey(0)
    kx, kadj, kp = jax.random.split(key, 3)

    x = jax.random.normal(kx, (N, input_dim), dtype=jnp.float32)

    # symmetric binary adjacency with self-loops
    a = (jax.random.uniform(kadj, (N, N)) < 0.3).astype(jnp.float32)
    adj = jnp.clip(a + a.T + jnp.eye(N, dtype=jnp.float32), 0.0, 1.0)
    # symmetric normalisation D^-1/2 A D^-1/2
    d_inv_sqrt = 1.0 / jnp.sqrt(jnp.sum(adj, axis=1))
    adj_norm = adj * d_inv_sqrt[:, None] * d_inv_sqrt[None, :]
    # DAEGC-style 2-hop proximity matrix M
    t = adj / jnp.sum(adj, axis=1, keepdims=True)
    M = (t + t @ t) / 2.0

    params = init_params(kp, input_dim, output_dim=output_dim,
                         embedding_dim=embedding_dim)

    outs = gcsee_forward(params, x, adj, adj_norm, M, v=1.0, alpha=0.2)
    outs = jax.block_until_ready(outs)

    x_bar, A_pred, predict, q_r, q_h, z = outs
    assert x_bar.shape == (N, input_dim)
    assert A_pred.shape == (N, N)
    assert predict.shape == (N, output_dim)
    assert q_r.shape == (N, output_dim) and q_h.shape == (N, output_dim)
    assert z.shape == (N, output_dim)
    for o in outs:
        assert bool(jnp.all(jnp.isfinite(o)))
    print("KERNEL_OK")
</pallas_src>

<mosaic_0001>
module attributes {stable_mosaic.version = 11 : i64} {
  func.func @_probe_kernel(%arg0: i32, %arg1: memref<8x128xf32, #tpu.memory_space<vmem>>, %arg2: memref<8x128xf32, #tpu.memory_space<vmem>>, %arg3: memref<8x128xf32, #tpu.memory_space<vmem>>) attributes {dimension_semantics = [#tpu.dimension_semantics<arbitrary>], iteration_bounds = array<i64: 2>, scalar_prefetch = 0 : i64, scratch_operands = 0 : i64, tpu.core_type = #tpu.core_type<tc>, window_params = [{pipeline_mode = #tpu.pipeline_mode<synchronous>, transform_indices = @transform_0, window_bounds = array<i64: 8, 128>}, {pipeline_mode = #tpu.pipeline_mode<synchronous>, transform_indices = @transform_1, window_bounds = array<i64: 8, 128>}, {pipeline_mode = #tpu.pipeline_mode<synchronous>, transform_indices = @transform_2, window_bounds = array<i64: 8, 128>}]} {
    %c0 = arith.constant 0 : index
    %c0_0 = arith.constant 0 : index
    %0 = vector.load %arg1[%c0, %c0_0] : memref<8x128xf32, #tpu.memory_space<vmem>>, vector<8x128xf32>
    %c0_1 = arith.constant 0 : index
    %c0_2 = arith.constant 0 : index
    %1 = vector.load %arg2[%c0_1, %c0_2] : memref<8x128xf32, #tpu.memory_space<vmem>>, vector<8x128xf32>
    %2 = arith.addf %0, %1 : vector<8x128xf32>
    %c0_3 = arith.constant 0 : index
    %c0_4 = arith.constant 0 : index
    %3 = vector.load %arg3[%c0_3, %c0_4] : memref<8x128xf32, #tpu.memory_space<vmem>>, vector<8x128xf32>
    tpu.vector_store %arg3[%c0_3, %c0_4], %2 {strides = array<i32>} : memref<8x128xf32, #tpu.memory_space<vmem>>, vector<8x128xf32>,
    return
  }
  func.func @transform_0(%arg0: i32) -> (i32, i32) {
    %c0_i32 = arith.constant 0 : i32
    %c0_i32_0 = arith.constant 0 : i32
    %c0_i32_1 = arith.constant 0 : i32
    return %c0_i32, %c0_i32_0 : i32, i32
  }
  func.func @transform_1(%arg0: i32) -> (i32, i32) {
    %c0_i32 = arith.constant 0 : i32
    %c0_i32_0 = arith.constant 0 : i32
    %c0_i32_1 = arith.constant 0 : i32
    return %c0_i32, %c0_i32_0 : i32, i32
  }
  func.func @transform_2(%arg0: i32) -> (i32, i32) {
    %c0_i32 = arith.constant 0 : i32
    %c0_i32_0 = arith.constant 0 : i32
    %c0_i32_1 = arith.constant 0 : i32
    return %c0_i32, %c0_i32_0 : i32, i32
  }
}

module attributes {stable_mosaic.version = 11 : i64} {
  func.func @_gat_proj_kernel(%arg0: i32, %arg1: memref<128x32xf32, #tpu.memory_space<vmem>>, %arg2: memref<32x500xbf16, #tpu.memory_space<vmem>>, %arg3: memref<1x500xf32, #tpu.memory_space<vmem>>, %arg4: memref<128x500xbf16, #tpu.memory_space<vmem>>, %arg5: memref<128x1xf32, #tpu.memory_space<vmem>>) attributes {dimension_semantics = [#tpu.dimension_semantics<parallel>], iteration_bounds = array<i64: 1>, scalar_prefetch = 0 : i64, scratch_operands = 0 : i64, tpu.core_type = #tpu.core_type<tc>, window_params = [{transform_indices = @transform_0, window_bounds = array<i64: 128, 32>}, {pipeline_mode = #tpu.pipeline_mode<synchronous>, transform_indices = @transform_1, window_bounds = array<i64: 32, 500>}, {pipeline_mode = #tpu.pipeline_mode<synchronous>, transform_indices = @transform_2, window_bounds = array<i64: 1, 500>}, {transform_indices = @transform_3, window_bounds = array<i64: 128, 500>}, {transform_indices = @transform_4, window_bounds = array<i64: 128, 1>}]} {
    %c0 = arith.constant 0 : index
    %c0_0 = arith.constant 0 : index
    %0 = vector.load %arg1[%c0, %c0_0] : memref<128x32xf32, #tpu.memory_space<vmem>>, vector<128x32xf32>
    %c0_1 = arith.constant 0 : index
    %c0_2 = arith.constant 0 : index
    %1 = vector.load %arg2[%c0_1, %c0_2] : memref<32x500xbf16, #tpu.memory_space<vmem>>, vector<32x500xbf16>
    %2 = arith.truncf %0 : vector<128x32xf32> to vector<128x32xbf16>
    %cst = arith.constant dense<0.000000e+00> : vector<128x500xf32>
    %3 = tpu.matmul %2, %1, %cst {dimension_numbers = #tpu.dot_dimension_numbers<[1], [0], [0], [1], [0, 0, 1, 1], [], []>} : vector<128x32xbf16>, vector<32x500xbf16>, vector<128x500xf32> -> vector<128x500xf32>
    %4 = arith.truncf %3 : vector<128x500xf32> to vector<128x500xbf16>
    %c0_3 = arith.constant 0 : index
    %c0_4 = arith.constant 0 : index
    %5 = vector.load %arg4[%c0_3, %c0_4] : memref<128x500xbf16, #tpu.memory_space<vmem>>, vector<128x500xbf16>
    tpu.vector_store %arg4[%c0_3, %c0_4], %4 {strides = array<i32>} : memref<128x500xbf16, #tpu.memory_space<vmem>>, vector<128x500xbf16>,
    %c0_5 = arith.constant 0 : index
    %c0_6 = arith.constant 0 : index
    %6 = vector.load %arg3[%c0_5, %c0_6] : memref<1x500xf32, #tpu.memory_space<vmem>>, vector<1x500xf32>
    %7 = vector.broadcast %6 : vector<1x500xf32> to vector<128x500xf32>
    %8 = arith.mulf %3, %7 : vector<128x500xf32>
    %cst_7 = arith.constant dense<0.000000e+00> : vector<128xf32>
    %9 = vector.multi_reduction <add>, %8, %cst_7 [1] : vector<128x500xf32> to vector<128xf32>
    %10 = vector.shape_cast %9 : vector<128xf32> to vector<128x1xf32>
    %c0_8 = arith.constant 0 : index
    %c0_9 = arith.constant 0 : index
    %11 = vector.load %arg5[%c0_8, %c0_9] : memref<128x1xf32, #tpu.memory_space<vmem>>, vector<128x1xf32>
    tpu.vector_store %arg5[%c0_8, %c0_9], %10 {strides = array<i32>} : memref<128x1xf32, #tpu.memory_space<vmem>>, vector<128x1xf32>,
    return
  }
  func.func @transform_0(%arg0: i32) -> (i32, i32) {
    %c0_i32 = arith.constant 0 : i32
    %c0_i32_0 = arith.constant 0 : i32
    return %arg0, %c0_i32 : i32, i32
  }
  func.func @transform_1(%arg0: i32) -> (i32, i32) {
    %c0_i32 = arith.constant 0 : i32
    %c0_i32_0 = arith.constant 0 : i32
    %c0_i32_1 = arith.constant 0 : i32
    return %c0_i32, %c0_i32_0 : i32, i32
  }
  func.func @transform_2(%arg0: i32) -> (i32, i32) {
    %c0_i32 = arith.constant 0 : i32
    %c0_i32_0 = arith.constant 0 : i32
    %c0_i32_1 = arith.constant 0 : i32
    return %c0_i32, %c0_i32_0 : i32, i32
  }
  func.func @transform_3(%arg0: i32) -> (i32, i32) {
    %c0_i32 = arith.constant 0 : i32
    %c0_i32_0 = arith.constant 0 : i32
    return %arg0, %c0_i32 : i32, i32
  }
  func.func @transform_4(%arg0: i32) -> (i32, i32) {
    %c0_i32 = arith.constant 0 : i32
    %c0_i32_0 = arith.constant 0 : i32
    return %arg0, %c0_i32 : i32, i32
  }
}

</mosaic_0001>

<llo_original>
// kernel: tpu_custom_call.1
$region0: #{tpu_custom_call.1}
  #allocation0 [shape = 'u32[]', space=smem, size = 0x4, offset = 0x4, fixed_abs, tag = 'smem constant byte address 0x4 - core index']
  #allocation1 [shape = 'u32[144,128]{1,0:T(1,128)}', space=vmem, size = 0x12000, scoped, tag = 'internal scratch']
  %s0 = inlined_call_operand.hbm [shape: f32[8,128], index: 0, kind: input, shape index: {}]
  %s1 = inlined_call_operand.hbm [shape: f32[8,128], index: 1, kind: input, shape index: {}]
  %s2 = inlined_call_operand.hbm [shape: f32[8,128], index: 2, kind: output, shape index: {}]
  %s3 = sld [smem:[#allocation0]]
  $region49: #{tpu_custom_call.1} parent=0
    _
  %s5 = ssub.s32 1, %s3
  %s6 = scalar_select 0, %s5, %s3
  $region1: #{tpu_custom_call.1} parent=0
    #allocation2 [shape = 'u8[4096]{0}', space=vmem, size = 0x1000, scoped, tag = 'input window, operand 0, single buffered']
    #allocation3 [shape = 's32[2]{0}', space=sflag, size = 0x8, scoped, tag = 'scoped memory for tpu_custom_call.1']
    #allocation4 [shape = 's32[2]{0}', space=sflag, size = 0x8, scoped, tag = 'scoped memory for tpu_custom_call.1']
    #allocation5 [shape = 'u8[4096]{0}', space=vmem, size = 0x1000, scoped, tag = 'input window, operand 1, single buffered']
    #allocation6 [shape = 's32[1]{0}', space=sflag, size = 0x4, scoped, tag = 'scoped memory for tpu_custom_call.1']
    #allocation7 [shape = 'u8[4096]{0}', space=vmem, size = 0x1000, scoped, tag = 'output window, operand 0, single buffered']
    %7 = vsyncpa [#allocation3], 0
    %8 = vsyncpa [#allocation6], 0
    %9 = vsyncpa [#allocation4], 0
    loop: start=0, step=1, limit=4
    $region2: #{tpu_custom_call.1} parent=1 // loop_pre_header
      _
    $region3: #{tpu_custom_call.1} parent=1 // loop_header
      %s11 = sphi 0, %s15
      %p12 = scmp.ge.s32.totalorder %s11, 4
      %s19 = sphi 0, %s19
      %s21 = sphi 0, %s19
      %s22 = sphi 0, %s21
      %s36 = sphi 0, %s22
      %s40 = sphi 0, %s40
      %s42 = sphi 0, %s40
      %s43 = sphi 0, %s42
      %s57 = sphi 0, %s43
      %s61 = sphi 0, %s61
      %s63 = sphi 0, %s61
      %s64 = sphi 0, %s63
      %s78 = sphi 0, %s64
    $region4: #{tpu_custom_call.1} parent=1 // loop_header_branch
      %14 = sbr.rel (%p12) target = $region8
    $region5: #{tpu_custom_call.1} parent=1 // loop_body
      %s16 = ssub.s32 %s11, 1
      %s17 = ssub.s32 %s11, 2
      %s18 = sadd.s32 %s11, 1
      %s20 = sadd.s32 %s19, 1
      %p23 = scmp.eq.s32.totalorder %s11, 1
      %p24 = scmp.ne.s32.totalorder %s19, %s21
      %p25 = scmp.eq.s32.totalorder %s11, 0
      %p26 = por %p24, %p25
      %p27 = scmp.ne.s32.totalorder %s19, %s21
      %p28 = scmp.eq.s32.totalorder %s16, 1
      %p29 = por %p27, %p28
      %p30 = scmp.ne.s32.totalorder %s21, %s22
      %p31 = scmp.eq.s32.totalorder %s16, 0
      %p32 = por %p30, %p31
      %p33 = scmp.ne.s32.totalorder %s21, %s22
      %p34 = scmp.eq.s32.totalorder %s17, 1
      %p35 = por %p33, %p34
      %p37 = scmp.ne.s32.totalorder %s22, %s36
      %p38 = scmp.eq.s32.totalorder %s17, 0
      %p39 = por %p37, %p38
      %s41 = sadd.s32 %s40, 1
      %p44 = scmp.eq.s32.totalorder %s11, 1
      %p45 = scmp.ne.s32.totalorder %s40, %s42
      %p46 = scmp.eq.s32.totalorder %s11, 0
      %p47 = por %p45, %p46
      %p48 = scmp.ne.s32.totalorder %s40, %s42
      %p49 = scmp.eq.s32.totalorder %s16, 1
      %p50 = por %p48, %p49
      %p51 = scmp.ne.s32.totalorder %s42, %s43
      %p52 = scmp.eq.s32.totalorder %s16, 0
      %p53 = por %p51, %p52
      %p54 = scmp.ne.s32.totalorder %s42, %s43
      %p55 = scmp.eq.s32.totalorder %s17, 1
      %p56 = por %p54, %p55
      %p58 = scmp.ne.s32.totalorder %s43, %s57
      %p59 = scmp.eq.s32.totalorder %s17, 0
      %p60 = por %p58, %p59
      %s62 = sadd.s32 %s61, 1
      %p65 = scmp.eq.s32.totalorder %s11, 1
      %p66 = scmp.ne.s32.totalorder %s61, %s63
      %p67 = scmp.eq.s32.totalorder %s11, 0
      %p68 = por %p66, %p67
      %p69 = scmp.ne.s32.totalorder %s61, %s63
      %p70 = scmp.eq.s32.totalorder %s16, 1
      %p71 = por %p69, %p70
      %p72 = scmp.ne.s32.totalorder %s63, %s64
      %p73 = scmp.eq.s32.totalorder %s16, 0
      %p74 = por %p72, %p73
      %p75 = scmp.ne.s32.totalorder %s63, %s64
      %p76 = scmp.eq.s32.totalorder %s17, 1
      %p77 = por %p75, %p76
      %p79 = scmp.ne.s32.totalorder %s64, %s78
      %p80 = scmp.eq.s32.totalorder %s17, 0
      %p81 = por %p79, %p80
      %p82 = scmp.le.s32.totalorder 1, %s11
      %p83 = scmp.lt.s32.totalorder %s11, 3
      %p84 = pnand %p82, %p83
      %p85 = pneg %p84
      // Predicated region
      $region9: #{tpu_custom_call.1} parent=5 // pred_check
        _
      $region10: #{tpu_custom_call.1} parent=5 // pred_check_branch
        %87 = sbr.rel (%p84) target = $region12
      $region11: #{tpu_custom_call.1} parent=5 // pred_region
        %s88 = ssub.s32 %s11, 1
        // Predicated region
        $region13: #{tpu_custom_call.1} parent=11 // pred_check
          %p89 = pneg %p32
        $region14: #{tpu_custom_call.1} parent=11 // pred_check_branch
          %91 = sbr.rel (%p89) target = $region16
        $region15: #{tpu_custom_call.1} parent=11 // pred_region
          %s93 = ssub.s32 128, 128
          %94 = vsyncadd [#allocation3], %s93
          %s96 = sshll.u32 [#allocation2], 4
          %s97 = int_to_ptr.vmem [resolvable:$true] %s96
          %99 = dma.hbm_to_vmem [thread:$0]  %s0, 128, %s97, [#allocation3]
        $region16: #{tpu_custom_call.1} parent=11 // pred_fallthru
          _
        // Predicated region
        $region17: #{tpu_custom_call.1} parent=11 // pred_check
          %p100 = pneg %p53
        $region18: #{tpu_custom_call.1} parent=11 // pred_check_branch
          %102 = sbr.rel (%p100) target = $region20
        $region19: #{tpu_custom_call.1} parent=11 // pred_region
          %s104 = ssub.s32 128, 128
          %105 = vsyncadd [#allocation6], %s104
          %s107 = sshll.u32 [#allocation5], 4
          %s108 = int_to_ptr.vmem [resolvable:$true] %s107
          %110 = dma.hbm_to_vmem [thread:$0]  %s1, 128, %s108, [#allocation6]
        $region20: #{tpu_custom_call.1} parent=11 // pred_fallthru
          _
      $region12: #{tpu_custom_call.1} parent=5 // pred_fallthru
        _
      %p111 = scmp.lt.s32.totalorder %s11, 2
      // Predicated region
      $region21: #{tpu_custom_call.1} parent=5 // pred_check
        %p112 = pneg %p111
      $region22: #{tpu_custom_call.1} parent=5 // pred_check_branch
        %114 = sbr.rel (%p112) target = $region24
      $region23: #{tpu_custom_call.1} parent=5 // pred_region
        _
      $region24: #{tpu_custom_call.1} parent=5 // pred_fallthru
        _
      %p115 = scmp.le.s32.totalorder 1, %s11
      %p116 = scmp.lt.s32.totalorder %s11, 3
      %p117 = pnand %p115, %p116
      %p118 = pneg %p117
      // Predicated region
      $region25: #{tpu_custom_call.1} parent=5 // pred_check
        _
      $region26: #{tpu_custom_call.1} parent=5 // pred_check_branch
        %120 = sbr.rel (%p117) target = $region28
      $region27: #{tpu_custom_call.1} parent=5 // pred_region
        %s121 = ssub.s32 %s11, 1
        // Predicated region
        $region29: #{tpu_custom_call.1} parent=27 // pred_check
          %p122 = pneg %p32
        $region30: #{tpu_custom_call.1} parent=27 // pred_check_branch
          %124 = sbr.rel (%p122) target = $region32
        $region31: #{tpu_custom_call.1} parent=27 // pred_region
          %125 = dma.done [#allocation3], 128
        $region32: #{tpu_custom_call.1} parent=27 // pred_fallthru
          _
        // Predicated region
        $region33: #{tpu_custom_call.1} parent=27 // pred_check
          %p126 = pneg %p53
        $region34: #{tpu_custom_call.1} parent=27 // pred_check_branch
          %128 = sbr.rel (%p126) target = $region36
        $region35: #{tpu_custom_call.1} parent=27 // pred_region
          %129 = dma.done [#allocation6], 128
        $region36: #{tpu_custom_call.1} parent=27 // pred_fallthru
          _
        %p130 = pneg %p32
        %p131 = pneg %p29
        %p132 = pneg %p53
        %p133 = pneg %p50
        %p134 = pneg %p74
        %p135 = pneg %p71
        %v136 = vld [vmem:[#allocation2] sm:$0xff]
        %v137 = vld [vmem:[#allocation5] sm:$0xff]
        %v138 = vadd.f32 %v136, %v137
        %139 = vst [vmem:[#allocation7] sm:$0xff] %v138
        // Predicated region
        $region37: #{tpu_custom_call.1} parent=27 // pred_check
          %p140 = pneg %p71
        $region38: #{tpu_custom_call.1} parent=27 // pred_check_branch
          %142 = sbr.rel (%p140) target = $region40
        $region39: #{tpu_custom_call.1} parent=27 // pred_region
          %s144 = ssub.s32 128, 128
          %145 = vsyncadd [#allocation4], %s144
          %s147 = sshll.u32 [#allocation7], 4
          %s148 = int_to_ptr.vmem [resolvable:$true] %s147
          %150 = dma.vmem_to_hbm [thread:$0]  %s148, 128, %s2, [#allocation4]
        $region40: #{tpu_custom_call.1} parent=27 // pred_fallthru
          _
        // Predicated region
        $region41: #{tpu_custom_call.1} parent=27 // pred_check
          %p151 = pneg %p71
        $region42: #{tpu_custom_call.1} parent=27 // pred_check_branch
          %153 = sbr.rel (%p151) target = $region44
        $region43: #{tpu_custom_call.1} parent=27 // pred_region
          %154 = dma.done [#allocation4], 128
        $region44: #{tpu_custom_call.1} parent=27 // pred_fallthru
          _
      $region28: #{tpu_custom_call.1} parent=5 // pred_fallthru
        _
      %p155 = scmp.le.s32.totalorder 2, %s11
      // Predicated region
      $region45: #{tpu_custom_call.1} parent=5 // pred_check
        %p156 = pneg %p155
      $region46: #{tpu_custom_call.1} parent=5 // pred_check_branch
        %158 = sbr.rel (%p156) target = $region48
      $region47: #{tpu_custom_call.1} parent=5 // pred_region
        %s159 = ssub.s32 %s11, 2
      $region48: #{tpu_custom_call.1} parent=5 // pred_fallthru
        _
    $region6: #{tpu_custom_call.1} parent=1 // loop_footer
      %s15 = sadd.s32 1, %s11
    $region7: #{tpu_custom_call.1} parent=1 // loop_footer_branch
      %10 = sbr.rel target = $region3
    $region8: #{tpu_custom_call.1} parent=1 // loop_exit
      _
    %160 = vsyncpa [#allocation3], 1
    %s161 = scalar_lea.sflag [#allocation3], 1
    %162 = vsyncpa %s161, 1
    %163 = vsyncpa [#allocation6], 1
    %164 = vsyncpa [#allocation4], 1
    %s165 = scalar_lea.sflag [#allocation4], 1
    %166 = vsyncpa %s165, 1

// kernel: tpu_custom_call.1
$region0: #{tpu_custom_call.1}
  #allocation0 [shape = 'u32[]', space=smem, size = 0x4, offset = 0x4, fixed_abs, tag = 'smem constant byte address 0x4 - core index']
  #allocation1 [shape = 'u32[144,128]{1,0:T(1,128)}', space=vmem, size = 0x12000, scoped, tag = 'internal scratch']
  %s0 = inlined_call_operand.vmem [shape: f32[128,32], index: 0, kind: input, shape index: {}]
  %s1 = inlined_call_operand.vmem [shape: bf16[32,500], index: 1, kind: input, shape index: {}]
  %s2 = inlined_call_operand.vmem [shape: f32[1,500], index: 2, kind: input, shape index: {}]
  %s3 = inlined_call_operand.vmem [shape: bf16[128,500], index: 3, kind: output, shape index: {0}]
  %s4 = inlined_call_operand.vmem [shape: f32[128,1], index: 4, kind: output, shape index: {1}]
  %5 = xla_tuple %s3, %s4
  %s6 = sld [smem:[#allocation0]]
  $region30: #{tpu_custom_call.1} parent=0
    _
  %s8 = ssub.s32 1, %s6
  %s9 = scalar_select 0, %s8, %s6
  // Predicated region
  $region2: #{tpu_custom_call.1} parent=0 // pred_check
    _
  $region3: #{tpu_custom_call.1} parent=0 // pred_check_branch
    %11 = sbr.rel (0) target = $region5
  $region4: #{tpu_custom_call.1} parent=0 // pred_region
    _
  $region5: #{tpu_custom_call.1} parent=0 // pred_fallthru
    _
  // Predicated region
  $region6: #{tpu_custom_call.1} parent=0 // pred_check
    _
  $region7: #{tpu_custom_call.1} parent=0 // pred_check_branch
    %13 = sbr.rel (0) target = $region9
  $region8: #{tpu_custom_call.1} parent=0 // pred_region
    _
  $region9: #{tpu_custom_call.1} parent=0 // pred_fallthru
    _
  // Predicated region
  $region10: #{tpu_custom_call.1} parent=0 // pred_check
    _
  $region11: #{tpu_custom_call.1} parent=0 // pred_check_branch
    %15 = sbr.rel (0) target = $region13
  $region12: #{tpu_custom_call.1} parent=0 // pred_region
    _
  $region13: #{tpu_custom_call.1} parent=0 // pred_fallthru
    _
  %v17 = vld [vmem:[%s0] sm:$0xff]
  %v18 = vld [vmem:[%s0 + $0x8] sm:$0xff]
  %v19 = vld [vmem:[%s0 + $0x10] sm:$0xff]
  %v20 = vld [vmem:[%s0 + $0x18] sm:$0xff]
  %v21 = vld [vmem:[%s0 + $0x20] sm:$0xff]
  %v22 = vld [vmem:[%s0 + $0x28] sm:$0xff]
  %v23 = vld [vmem:[%s0 + $0x30] sm:$0xff]
  %v24 = vld [vmem:[%s0 + $0x38] sm:$0xff]
  %v25 = vld [vmem:[%s0 + $0x40] sm:$0xff]
  %v26 = vld [vmem:[%s0 + $0x48] sm:$0xff]
  %v27 = vld [vmem:[%s0 + $0x50] sm:$0xff]
  %v28 = vld [vmem:[%s0 + $0x58] sm:$0xff]
  %v29 = vld [vmem:[%s0 + $0x60] sm:$0xff]
  %v30 = vld [vmem:[%s0 + $0x68] sm:$0xff]
  %v31 = vld [vmem:[%s0 + $0x70] sm:$0xff]
  %v32 = vld [vmem:[%s0 + $0x78] sm:$0xff]
  %v33 = vld [vmem:[%s1] sm:$0xff]
  %v34 = vld [vmem:[%s1 + $0x8] sm:$0xff]
  %v35 = vld [vmem:[%s1 + $0x10] sm:$0xff]
  %v36 = vld [vmem:[%s1 + $0x18] sm:$0xff]
  %v37 = vld [vmem:[%s1 + $0x20] sm:$0xff]
  %v38 = vld [vmem:[%s1 + $0x28] sm:$0xff]
  %v39 = vld [vmem:[%s1 + $0x30] sm:$0xff]
  %v40 = vld [vmem:[%s1 + $0x38] sm:$0xff]
  %v41 = vpack.c.bf16 %v18, %v17
  %v42 = vpack.c.bf16 %v20, %v19
  %v43 = vpack.c.bf16 %v22, %v21
  %v44 = vpack.c.bf16 %v24, %v23
  %v45 = vpack.c.bf16 %v26, %v25
  %v46 = vpack.c.bf16 %v28, %v27
  %v47 = vpack.c.bf16 %v30, %v29
  %v48 = vpack.c.bf16 %v32, %v31
  %v57 = vunpack.c.l.b16 %v33
  %v58 = vunpack.c.h.b16 %v33
  %v59 = vunpack.c.l.b16 %v34
  %v60 = vunpack.c.h.b16 %v34
  %v61 = vunpack.c.l.b16 %v35
  %v62 = vunpack.c.h.b16 %v35
  %v63 = vunpack.c.l.b16 %v36
  %v64 = vunpack.c.h.b16 %v36
  %v65 = vunpack.c.l.b16 %v37
  %v66 = vunpack.c.h.b16 %v37
  %v67 = vunpack.c.l.b16 %v38
  %v68 = vunpack.c.h.b16 %v38
  %v69 = vunpack.c.l.b16 %v39
  %v70 = vunpack.c.h.b16 %v39
  %v71 = vunpack.c.l.b16 %v40
  %v72 = vunpack.c.h.b16 %v40
  %v73 = vpack.c.b16 %v61, %v57
  %v74 = vpack.c.b16 %v62, %v58
  %v75 = vpack.c.b16 %v63, %v59
  %v76 = vpack.c.b16 %v64, %v60
  %v77 = vpack.c.b16 %v69, %v65
  %v78 = vpack.c.b16 %v70, %v66
  %v79 = vpack.c.b16 %v71, %v67
  %v80 = vpack.c.b16 %v72, %v68
  %vm89 = vcmask 261120
  %v91 = vsel %vm89, %v41, 0
  %v94 = vsel %vm89, %v42, 0
  %v97 = vsel %vm89, %v43, 0
  %v100 = vsel %vm89, %v44, 0
  %v103 = vsel %vm89, %v45, 0
  %v106 = vsel %vm89, %v46, 0
  %v109 = vsel %vm89, %v47, 0
  %v112 = vsel %vm89, %v48, 0
  %114 = vmatprep.subr.bf16.mxu0 %v74
  %115 = vmatpush1.bf16.msra.mxu0 %v73
  %116 = vmatprep.subr.bf16.mxu0 %v78
  %117 = vmatpush1.bf16.msra.mxu0 %v77
  %118 = vmatprep.subr.bf16.mxu0 0
  %119 = vmatpush1.bf16.msra.mxu0 0
  %120 = vmatprep.subr.bf16.mxu0 0
  %121 = vmatpush1.bf16.msra.mxu0 0
  %122 = vmatprep.subr.bf16.mxu0 0
  %123 = vmatpush1.bf16.msra.mxu0 0
  %124 = vmatprep.subr.bf16.mxu0 0
  %125 = vmatpush1.bf16.msra.mxu0 0
  %126 = vmatprep.subr.bf16.mxu0 0
  %127 = vmatpush1.bf16.msra.mxu0 0
  %128 = vmatprep.subr.bf16.mxu0 0
  %129 = vmatpush1.bf16.msra.mxu0 0
  %130 = vmatprep.subr.bf16.mxu0 0
  %131 = vmatpush1.bf16.msra.mxu0 0
  %132 = vmatprep.subr.bf16.mxu0 0
  %133 = vmatpush1.bf16.msra.mxu0 0
  %134 = vmatprep.subr.bf16.mxu0 0
  %135 = vmatpush1.bf16.msra.mxu0 0
  %136 = vmatprep.subr.bf16.mxu0 0
  %137 = vmatpush1.bf16.msra.mxu0 0
  %138 = vmatprep.subr.bf16.mxu0 0
  %139 = vmatpush1.bf16.msra.mxu0 0
  %140 = vmatprep.subr.bf16.mxu0 0
  %141 = vmatpush1.bf16.msra.mxu0 0
  %142 = vmatprep.subr.bf16.mxu0 0
  %143 = vmatpush1.bf16.msra.mxu0 0
  %144 = vmatprep.subr.bf16.mxu0 0
  %145 = vmatpush1.bf16.msra.mxu0 0
  %146 = vmatprep.mubr.bf16.mxu0 0
  %147 = vmatmul.mubr.bf16.gmra.mrb[0].mxu0 %v91
  %v148 = vpop.f32.mrb[0].mxu0
  %v149 = vadd.f32 0.0, %v148
  %v150 = vpop.f32.mrb[0].mxu0
  %v151 = vadd.f32 0.0, %v150
  %v152 = vpop.f32.mrb[0].mxu0
  %v153 = vadd.f32 0.0, %v152
  %v154 = vpop.f32.mrb[0].mxu0
  %v155 = vadd.f32 0.0, %v154
  %156 = vmatprep.mubr.bf16.mxu0 0
  %157 = vmatmul.mubr.bf16.gmra.mrb[0].mxu0 %v94
  %v158 = vpop.f32.mrb[0].mxu0
  %v159 = vadd.f32 0.0, %v158
  %v160 = vpop.f32.mrb[0].mxu0
  %v161 = vadd.f32 0.0, %v160
  %v162 = vpop.f32.mrb[0].mxu0
  %v163 = vadd.f32 0.0, %v162
  %v164 = vpop.f32.mrb[0].mxu0
  %v165 = vadd.f32 0.0, %v164
  %166 = vmatprep.mubr.bf16.mxu0 0
  %167 = vmatmul.mubr.bf16.gmra.mrb[0].mxu0 %v97
  %v168 = vpop.f32.mrb[0].mxu0
  %v169 = vadd.f32 0.0, %v168
  %v170 = vpop.f32.mrb[0].mxu0
  %v171 = vadd.f32 0.0, %v170
  %v172 = vpop.f32.mrb[0].mxu0
  %v173 = vadd.f32 0.0, %v172
  %v174 = vpop.f32.mrb[0].mxu0
  %v175 = vadd.f32 0.0, %v174
  %176 = vmatprep.mubr.bf16.mxu0 0
  %177 = vmatmul.mubr.bf16.gmra.mrb[0].mxu0 %v100
  %v178 = vpop.f32.mrb[0].mxu0
  %v179 = vadd.f32 0.0, %v178
  %v180 = vpop.f32.mrb[0].mxu0
  %v181 = vadd.f32 0.0, %v180
  %v182 = vpop.f32.mrb[0].mxu0
  %v183 = vadd.f32 0.0, %v182
  %v184 = vpop.f32.mrb[0].mxu0
  %v185 = vadd.f32 0.0, %v184
  %186 = vmatprep.mubr.bf16.mxu0 0
  %187 = vmatmul.mubr.bf16.gmra.mrb[0].mxu0 %v103
  %v188 = vpop.f32.mrb[0].mxu0
  %v189 = vadd.f32 0.0, %v188
  %v190 = vpop.f32.mrb[0].mxu0
  %v191 = vadd.f32 0.0, %v190
  %v192 = vpop.f32.mrb[0].mxu0
  %v193 = vadd.f32 0.0, %v192
  %v194 = vpop.f32.mrb[0].mxu0
  %v195 = vadd.f32 0.0, %v194
  %196 = vmatprep.mubr.bf16.mxu0 0
  %197 = vmatmul.mubr.bf16.gmra.mrb[0].mxu0 %v106
  %v198 = vpop.f32.mrb[0].mxu0
  %v199 = vadd.f32 0.0, %v198
  %v200 = vpop.f32.mrb[0].mxu0
  %v201 = vadd.f32 0.0, %v200
  %v202 = vpop.f32.mrb[0].mxu0
  %v203 = vadd.f32 0.0, %v202
  %v204 = vpop.f32.mrb[0].mxu0
  %v205 = vadd.f32 0.0, %v204
  %206 = vmatprep.mubr.bf16.mxu0 0
  %207 = vmatmul.mubr.bf16.gmra.mrb[0].mxu0 %v109
  %v208 = vpop.f32.mrb[0].mxu0
  %v209 = vadd.f32 0.0, %v208
  %v210 = vpop.f32.mrb[0].mxu0
  %v211 = vadd.f32 0.0, %v210
  %v212 = vpop.f32.mrb[0].mxu0
  %v213 = vadd.f32 0.0, %v212
  %v214 = vpop.f32.mrb[0].mxu0
  %v215 = vadd.f32 0.0, %v214
  %216 = vmatprep.mubr.bf16.mxu0 0
  %217 = vmatmul.mubr.bf16.gmra.mrb[0].mxu0 %v112
  %v218 = vpop.f32.mrb[0].mxu0
  %v219 = vadd.f32 0.0, %v218
  %v220 = vpop.f32.mrb[0].mxu0
  %v221 = vadd.f32 0.0, %v220
  %v222 = vpop.f32.mrb[0].mxu0
  %v223 = vadd.f32 0.0, %v222
  %v224 = vpop.f32.mrb[0].mxu0
  %v225 = vadd.f32 0.0, %v224
  %226 = vdwg.mxu0
  %227 = vmatprep.subr.bf16.mxu0 %v76
  %228 = vmatpush1.bf16.msra.mxu0 %v75
  %229 = vmatprep.subr.bf16.mxu0 %v80
  %230 = vmatpush1.bf16.msra.mxu0 %v79
  %231 = vmatprep.subr.bf16.mxu0 0
  %232 = vmatpush1.bf16.msra.mxu0 0
  %233 = vmatprep.subr.bf16.mxu0 0
  %234 = vmatpush1.bf16.msra.mxu0 0
  %235 = vmatprep.subr.bf16.mxu0 0
  %236 = vmatpush1.bf16.msra.mxu0 0
  %237 = vmatprep.subr.bf16.mxu0 0
  %238 = vmatpush1.bf16.msra.mxu0 0
  %239 = vmatprep.subr.bf16.mxu0 0
  %240 = vmatpush1.bf16.msra.mxu0 0
  %241 = vmatprep.subr.bf16.mxu0 0
  %242 = vmatpush1.bf16.msra.mxu0 0
  %243 = vmatprep.subr.bf16.mxu0 0
  %244 = vmatpush1.bf16.msra.mxu0 0
  %245 = vmatprep.subr.bf16.mxu0 0
  %246 = vmatpush1.bf16.msra.mxu0 0
  %247 = vmatprep.subr.bf16.mxu0 0
  %248 = vmatpush1.bf16.msra.mxu0 0
  %249 = vmatprep.subr.bf16.mxu0 0
  %250 = vmatpush1.bf16.msra.mxu0 0
  %251 = vmatprep.subr.bf16.mxu0 0
  %252 = vmatpush1.bf16.msra.mxu0 0
  %253 = vmatprep.subr.bf16.mxu0 0
  %254 = vmatpush1.bf16.msra.mxu0 0
  %255 = vmatprep.subr.bf16.mxu0 0
  %256 = vmatpush1.bf16.msra.mxu0 0
  %257 = vmatprep.subr.bf16.mxu0 0
  %258 = vmatpush1.bf16.msra.mxu0 0
  %259 = vmatprep.mubr.bf16.mxu0 0
  %260 = vmatmul.mubr.bf16.gmra.mrb[0].mxu0 %v91
  %v261 = vpop.f32.mrb[0].mxu0
  %v262 = vadd.f32 0.0, %v261
  %v263 = vpop.f32.mrb[0].mxu0
  %v264 = vadd.f32 0.0, %v263
  %v265 = vpop.f32.mrb[0].mxu0
  %v266 = vadd.f32 0.0, %v265
  %v267 = vpop.f32.mrb[0].mxu0
  %v268 = vadd.f32 0.0, %v267
  %269 = vmatprep.mubr.bf16.mxu0 0
  %270 = vmatmul.mubr.bf16.gmra.mrb[0].mxu0 %v94
  %v271 = vpop.f32.mrb[0].mxu0
  %v272 = vadd.f32 0.0, %v271
  %v273 = vpop.f32.mrb[0].mxu0
  %v274 = vadd.f32 0.0, %v273
  %v275 = vpop.f32.mrb[0].mxu0
  %v276 = vadd.f32 0.0, %v275
  %v277 = vpop.f32.mrb[0].mxu0
  %v278 = vadd.f32 0.0, %v277
  %279 = vmatprep.mubr.bf16.mxu0 0
  %280 = vmatmul.mubr.bf16.gmra.mrb[0].mxu0 %v97
  %v281 = vpop.f32.mrb[0].mxu0
  %v282 = vadd.f32 0.0, %v281
  %v283 = vpop.f32.mrb[0].mxu0
  %v284 = vadd.f32 0.0, %v283
  %v285 = vpop.f32.mrb[0].mxu0
  %v286 = vadd.f32 0.0, %v285
  %v287 = vpop.f32.mrb[0].mxu0
  %v288 = vadd.f32 0.0, %v287
  %289 = vmatprep.mubr.bf16.mxu0 0
  %290 = vmatmul.mubr.bf16.gmra.mrb[0].mxu0 %v100
  %v291 = vpop.f32.mrb[0].mxu0
  %v292 = vadd.f32 0.0, %v291
  %v293 = vpop.f32.mrb[0].mxu0
  %v294 = vadd.f32 0.0, %v293
  %v295 = vpop.f32.mrb[0].mxu0
  %v296 = vadd.f32 0.0, %v295
  %v297 = vpop.f32.mrb[0].mxu0
  %v298 = vadd.f32 0.0, %v297
  %299 = vmatprep.mubr.bf16.mxu0 0
  %300 = vmatmul.mubr.bf16.gmra.mrb[0].mxu0 %v103
  %v301 = vpop.f32.mrb[0].mxu0
  %v302 = vadd.f32 0.0, %v301
  %v303 = vpop.f32.mrb[0].mxu0
  %v304 = vadd.f32 0.0, %v303
  %v305 = vpop.f32.mrb[0].mxu0
  %v306 = vadd.f32 0.0, %v305
  %v307 = vpop.f32.mrb[0].mxu0
  %v308 = vadd.f32 0.0, %v307
  %309 = vmatprep.mubr.bf16.mxu0 0
  %310 = vmatmul.mubr.bf16.gmra.mrb[0].mxu0 %v106
  %v311 = vpop.f32.mrb[0].mxu0
  %v312 = vadd.f32 0.0, %v311
  %v313 = vpop.f32.mrb[0].mxu0
  %v314 = vadd.f32 0.0, %v313
  %v315 = vpop.f32.mrb[0].mxu0
  %v316 = vadd.f32 0.0, %v315
  %v317 = vpop.f32.mrb[0].mxu0
  %v318 = vadd.f32 0.0, %v317
  %319 = vmatprep.mubr.bf16.mxu0 0
  %320 = vmatmul.mubr.bf16.gmra.mrb[0].mxu0 %v109
  %v321 = vpop.f32.mrb[0].mxu0
  %v322 = vadd.f32 0.0, %v321
  %v323 = vpop.f32.mrb[0].mxu0
  %v324 = vadd.f32 0.0, %v323
  %v325 = vpop.f32.mrb[0].mxu0
  %v326 = vadd.f32 0.0, %v325
  %v327 = vpop.f32.mrb[0].mxu0
  %v328 = vadd.f32 0.0, %v327
  %329 = vmatprep.mubr.bf16.mxu0 0
  %330 = vmatmul.mubr.bf16.gmra.mrb[0].mxu0 %v112
  %v331 = vpop.f32.mrb[0].mxu0
  %v332 = vadd.f32 0.0, %v331
  %v333 = vpop.f32.mrb[0].mxu0
  %v334 = vadd.f32 0.0, %v333
  %v335 = vpop.f32.mrb[0].mxu0
  %v336 = vadd.f32 0.0, %v335
  %v337 = vpop.f32.mrb[0].mxu0
  %v338 = vadd.f32 0.0, %v337
  %339 = vdwg.mxu0
  %v340 = vpack.c.bf16 %v153, %v149
  %v341 = vpack.c.bf16 %v155, %v151
  %v342 = vpack.c.bf16 %v266, %v262
  %v343 = vpack.c.bf16 %v268, %v264
  %v344 = vpack.c.bf16 %v163, %v159
  %v345 = vpack.c.bf16 %v165, %v161
  %v346 = vpack.c.bf16 %v276, %v272
  %v347 = vpack.c.bf16 %v278, %v274
  %v348 = vpack.c.bf16 %v173, %v169
  %v349 = vpack.c.bf16 %v175, %v171
  %v350 = vpack.c.bf16 %v286, %v282
  %v351 = vpack.c.bf16 %v288, %v284
  %v352 = vpack.c.bf16 %v183, %v179
  %v353 = vpack.c.bf16 %v185, %v181
  %v354 = vpack.c.bf16 %v296, %v292
  %v355 = vpack.c.bf16 %v298, %v294
  %v356 = vpack.c.bf16 %v193, %v189
  %v357 = vpack.c.bf16 %v195, %v191
  %v358 = vpack.c.bf16 %v306, %v302
  %v359 = vpack.c.bf16 %v308, %v304
  %v360 = vpack.c.bf16 %v203, %v199
  %v361 = vpack.c.bf16 %v205, %v201
  %v362 = vpack.c.bf16 %v316, %v312
  %v363 = vpack.c.bf16 %v318, %v314
  %v364 = vpack.c.bf16 %v213, %v209
  %v365 = vpack.c.bf16 %v215, %v211
  %v366 = vpack.c.bf16 %v326, %v322
  %v367 = vpack.c.bf16 %v328, %v324
  %v368 = vpack.c.bf16 %v223, %v219
  %v369 = vpack.c.bf16 %v225, %v221
  %v370 = vpack.c.bf16 %v336, %v332
  %v371 = vpack.c.bf16 %v338, %v334
  %v404 = vunpack.c.l.b16 %v340
  %v405 = vunpack.c.l.b16 %v341
  %v406 = vunpack.c.l.b16 %v342
  %v407 = vunpack.c.l.b16 %v343
  %v408 = vunpack.c.h.b16 %v340
  %v409 = vunpack.c.h.b16 %v341
  %v410 = vunpack.c.h.b16 %v342
  %v411 = vunpack.c.h.b16 %v343
  %v412 = vunpack.c.l.b16 %v344
  %v413 = vunpack.c.l.b16 %v345
  %v414 = vunpack.c.l.b16 %v346
  %v415 = vunpack.c.l.b16 %v347
  %v416 = vunpack.c.h.b16 %v344
  %v417 = vunpack.c.h.b16 %v345
  %v418 = vunpack.c.h.b16 %v346
  %v419 = vunpack.c.h.b16 %v347
  %v420 = vunpack.c.l.b16 %v348
  %v421 = vunpack.c.l.b16 %v349
  %v422 = vunpack.c.l.b16 %v350
  %v423 = vunpack.c.l.b16 %v351
  %v424 = vunpack.c.h.b16 %v348
  %v425 = vunpack.c.h.b16 %v349
  %v426 = vunpack.c.h.b16 %v350
  %v427 = vunpack.c.h.b16 %v351
  %v428 = vunpack.c.l.b16 %v352
  %v429 = vunpack.c.l.b16 %v353
  %v430 = vunpack.c.l.b16 %v354
  %v431 = vunpack.c.l.b16 %v355
  %v432 = vunpack.c.h.b16 %v352
  %v433 = vunpack.c.h.b16 %v353
  %v434 = vunpack.c.h.b16 %v354
  %v435 = vunpack.c.h.b16 %v355
  %v436 = vunpack.c.l.b16 %v356
  %v437 = vunpack.c.l.b16 %v357
  %v438 = vunpack.c.l.b16 %v358
  %v439 = vunpack.c.l.b16 %v359
  %v440 = vunpack.c.h.b16 %v356
  %v441 = vunpack.c.h.b16 %v357
  %v442 = vunpack.c.h.b16 %v358
  %v443 = vunpack.c.h.b16 %v359
  %v444 = vunpack.c.l.b16 %v360
  %v445 = vunpack.c.l.b16 %v361
  %v446 = vunpack.c.l.b16 %v362
  %v447 = vunpack.c.l.b16 %v363
  %v448 = vunpack.c.h.b16 %v360
  %v449 = vunpack.c.h.b16 %v361
  %v450 = vunpack.c.h.b16 %v362
  %v451 = vunpack.c.h.b16 %v363
  %v452 = vunpack.c.l.b16 %v364
  %v453 = vunpack.c.l.b16 %v365
  %v454 = vunpack.c.l.b16 %v366
  %v455 = vunpack.c.l.b16 %v367
  %v456 = vunpack.c.h.b16 %v364
  %v457 = vunpack.c.h.b16 %v365
  %v458 = vunpack.c.h.b16 %v366
  %v459 = vunpack.c.h.b16 %v367
  %v460 = vunpack.c.l.b16 %v368
  %v461 = vunpack.c.l.b16 %v369
  %v462 = vunpack.c.l.b16 %v370
  %v463 = vunpack.c.l.b16 %v371
  %v464 = vunpack.c.h.b16 %v368
  %v465 = vunpack.c.h.b16 %v369
  %v466 = vunpack.c.h.b16 %v370
  %v467 = vunpack.c.h.b16 %v371
  %v468 = vpack.c.b16 %v405, %v404
  %v469 = vpack.c.b16 %v407, %v406
  %v470 = vpack.c.b16 %v409, %v408
  %v471 = vpack.c.b16 %v411, %v410
  %v472 = vpack.c.b16 %v413, %v412
  %v473 = vpack.c.b16 %v415, %v414
  %v474 = vpack.c.b16 %v417, %v416
  %v475 = vpack.c.b16 %v419, %v418
  %v476 = vpack.c.b16 %v421, %v420
  %v477 = vpack.c.b16 %v423, %v422
  %v478 = vpack.c.b16 %v425, %v424
  %v479 = vpack.c.b16 %v427, %v426
  %v480 = vpack.c.b16 %v429, %v428
  %v481 = vpack.c.b16 %v431, %v430
  %v482 = vpack.c.b16 %v433, %v432
  %v483 = vpack.c.b16 %v435, %v434
  %v484 = vpack.c.b16 %v437, %v436
  %v485 = vpack.c.b16 %v439, %v438
  %v486 = vpack.c.b16 %v441, %v440
  %v487 = vpack.c.b16 %v443, %v442
  %v488 = vpack.c.b16 %v445, %v444
  %v489 = vpack.c.b16 %v447, %v446
  %v490 = vpack.c.b16 %v449, %v448
  %v491 = vpack.c.b16 %v451, %v450
  %v492 = vpack.c.b16 %v453, %v452
  %v493 = vpack.c.b16 %v455, %v454
  %v494 = vpack.c.b16 %v457, %v456
  %v495 = vpack.c.b16 %v459, %v458
  %v496 = vpack.c.b16 %v461, %v460
  %v497 = vpack.c.b16 %v463, %v462
  %v498 = vpack.c.b16 %v465, %v464
  %v499 = vpack.c.b16 %v467, %v466
  %532 = vst [vmem:[%s3] sm:$0xff] %v468
  %vm533 = vcmask 1043456
  %vm534 = vcmask 949252
  %vm535 = vmor %vm534, %vm533
  %536 = vst.msk [vmem:[%s3 + $0x8] sm:$0xff] %vm535, %v469
  %537 = vst [vmem:[%s3 + $0x10] sm:$0xff] %v470
  %538 = vst.msk [vmem:[%s3 + $0x18] sm:$0xff] %vm535, %v471
  %539 = vst [vmem:[%s3 + $0x20] sm:$0xff] %v472
  %540 = vst.msk [vmem:[%s3 + $0x28] sm:$0xff] %vm535, %v473
  %541 = vst [vmem:[%s3 + $0x30] sm:$0xff] %v474
  %542 = vst.msk [vmem:[%s3 + $0x38] sm:$0xff] %vm535, %v475
  %543 = vst [vmem:[%s3 + $0x40] sm:$0xff] %v476
  %544 = vst.msk [vmem:[%s3 + $0x48] sm:$0xff] %vm535, %v477
  %545 = vst [vmem:[%s3 + $0x50] sm:$0xff] %v478
  %546 = vst.msk [vmem:[%s3 + $0x58] sm:$0xff] %vm535, %v479
  %547 = vst [vmem:[%s3 + $0x60] sm:$0xff] %v480
  %548 = vst.msk [vmem:[%s3 + $0x68] sm:$0xff] %vm535, %v481
  %549 = vst [vmem:[%s3 + $0x70] sm:$0xff] %v482
  %550 = vst.msk [vmem:[%s3 + $0x78] sm:$0xff] %vm535, %v483
  %551 = vst [vmem:[%s3 + $0x80] sm:$0xff] %v484
  %552 = vst.msk [vmem:[%s3 + $0x88] sm:$0xff] %vm535, %v485
  %553 = vst [vmem:[%s3 + $0x90] sm:$0xff] %v486
  %554 = vst.msk [vmem:[%s3 + $0x98] sm:$0xff] %vm535, %v487
  %555 = vst [vmem:[%s3 + $0xa0] sm:$0xff] %v488
  %556 = vst.msk [vmem:[%s3 + $0xa8] sm:$0xff] %vm535, %v489
  %557 = vst [vmem:[%s3 + $0xb0] sm:$0xff] %v490
  %558 = vst.msk [vmem:[%s3 + $0xb8] sm:$0xff] %vm535, %v491
  %559 = vst [vmem:[%s3 + $0xc0] sm:$0xff] %v492
  %560 = vst.msk [vmem:[%s3 + $0xc8] sm:$0xff] %vm535, %v493
  %561 = vst [vmem:[%s3 + $0xd0] sm:$0xff] %v494
  %562 = vst.msk [vmem:[%s3 + $0xd8] sm:$0xff] %vm535, %v495
  %563 = vst [vmem:[%s3 + $0xe0] sm:$0xff] %v496
  %564 = vst.msk [vmem:[%s3 + $0xe8] sm:$0xff] %vm535, %v497
  %565 = vst [vmem:[%s3 + $0xf0] sm:$0xff] %v498
  %566 = vst.msk [vmem:[%s3 + $0xf8] sm:$0xff] %vm535, %v499
  %v567 = vld [vmem:[%s2] sm:$0xf]
  %v569 = vlaneseq
  %v570 = vshrl.u32 %v569, 7
  %v571 = vsub.s32 0, %v570
  %v572 = vrot.slane %v567, %v571
  %v573 = vlaneseq
  %v574 = vshrl.u32 %v573, 7
  %v575 = vsub.s32 1, %v574
  %v576 = vrot.slane %v567, %v575
  %v577 = vlaneseq
  %v578 = vshrl.u32 %v577, 7
  %v579 = vsub.s32 2, %v578
  %v580 = vrot.slane %v567, %v579
  %v581 = vlaneseq
  %v582 = vshrl.u32 %v581, 7
  %v583 = vsub.s32 3, %v582
  %v584 = vrot.slane %v567, %v583
  %v589 = vmul.f32 %v149, %v572
  %v590 = vmul.f32 %v151, %v576
  %v591 = vmul.f32 %v262, %v580
  %v592 = vmul.f32 %v264, %v584
  %v593 = vmul.f32 %v153, %v572
  %v594 = vmul.f32 %v155, %v576
  %v595 = vmul.f32 %v266, %v580
  %v596 = vmul.f32 %v268, %v584
  %v597 = vmul.f32 %v159, %v572
  %v598 = vmul.f32 %v161, %v576
  %v599 = vmul.f32 %v272, %v580
  %v600 = vmul.f32 %v274, %v584
  %v601 = vmul.f32 %v163, %v572
  %v602 = vmul.f32 %v165, %v576
  %v603 = vmul.f32 %v276, %v580
  %v604 = vmul.f32 %v278, %v584
  %v605 = vmul.f32 %v169, %v572
  %v606 = vmul.f32 %v171, %v576
  %v607 = vmul.f32 %v282, %v580
  %v608 = vmul.f32 %v284, %v584
  %v609 = vmul.f32 %v173, %v572
  %v610 = vmul.f32 %v175, %v576
  %v611 = vmul.f32 %v286, %v580
  %v612 = vmul.f32 %v288, %v584
  %v613 = vmul.f32 %v179, %v572
  %v614 = vmul.f32 %v181, %v576
  %v615 = vmul.f32 %v292, %v580
  %v616 = vmul.f32 %v294, %v584
  %v617 = vmul.f32 %v183, %v572
  %v618 = vmul.f32 %v185, %v576
  %v619 = vmul.f32 %v296, %v580
  %v620 = vmul.f32 %v298, %v584
  %v621 = vmul.f32 %v189, %v572
  %v622 = vmul.f32 %v191, %v576
  %v623 = vmul.f32 %v302, %v580
  %v624 = vmul.f32 %v304, %v584
  %v625 = vmul.f32 %v193, %v572
  %v626 = vmul.f32 %v195, %v576
  %v627 = vmul.f32 %v306, %v580
  %v628 = vmul.f32 %v308, %v584
  %v629 = vmul.f32 %v199, %v572
  %v630 = vmul.f32 %v201, %v576
  %v631 = vmul.f32 %v312, %v580
  %v632 = vmul.f32 %v314, %v584
  %v633 = vmul.f32 %v203, %v572
  %v634 = vmul.f32 %v205, %v576
  %v635 = vmul.f32 %v316, %v580
  %v636 = vmul.f32 %v318, %v584
  %v637 = vmul.f32 %v209, %v572
  %v638 = vmul.f32 %v211, %v576
  %v639 = vmul.f32 %v322, %v580
  %v640 = vmul.f32 %v324, %v584
  %v641 = vmul.f32 %v213, %v572
  %v642 = vmul.f32 %v215, %v576
  %v643 = vmul.f32 %v326, %v580
  %v644 = vmul.f32 %v328, %v584
  %v645 = vmul.f32 %v219, %v572
  %v646 = vmul.f32 %v221, %v576
  %v647 = vmul.f32 %v332, %v580
  %v648 = vmul.f32 %v334, %v584
  %v649 = vmul.f32 %v223, %v572
  %v650 = vmul.f32 %v225, %v576
  %v651 = vmul.f32 %v336, %v580
  %v652 = vmul.f32 %v338, %v584
  %v653 = vadd.f32 %v589, %v590
  %v654 = vadd.f32 %v653, %v591
  %vm655 = vcmask 949248
  %v656 = vsel %vm655, %v592, 0.0
  %v657 = vadd.f32 %v654, %v656
  %658 = vadd.xlane.f32.xlu0 %v657
  %v659 = vpop.xlane.xlu0 %658
  %v660 = vadd.f32 %v593, %v594
  %v661 = vadd.f32 %v660, %v595
  %v662 = vsel %vm655, %v596, 0.0
  %v663 = vadd.f32 %v661, %v662
  %664 = vadd.xlane.f32.xlu0 %v663
  %v665 = vpop.xlane.xlu0 %664
  %v666 = vadd.f32 %v597, %v598
  %v667 = vadd.f32 %v666, %v599
  %v668 = vsel %vm655, %v600, 0.0
  %v669 = vadd.f32 %v667, %v668
  %670 = vadd.xlane.f32.xlu0 %v669
  %v671 = vpop.xlane.xlu0 %670
  %v672 = vadd.f32 %v601, %v602
  %v673 = vadd.f32 %v672, %v603
  %v674 = vsel %vm655, %v604, 0.0
  %v675 = vadd.f32 %v673, %v674
  %676 = vadd.xlane.f32.xlu0 %v675
  %v677 = vpop.xlane.xlu0 %676
  %v678 = vadd.f32 %v605, %v606
  %v679 = vadd.f32 %v678, %v607
  %v680 = vsel %vm655, %v608, 0.0
  %v681 = vadd.f32 %v679, %v680
  %682 = vadd.xlane.f32.xlu0 %v681
  %v683 = vpop.xlane.xlu0 %682
  %v684 = vadd.f32 %v609, %v610
  %v685 = vadd.f32 %v684, %v611
  %v686 = vsel %vm655, %v612, 0.0
  %v687 = vadd.f32 %v685, %v686
  %688 = vadd.xlane.f32.xlu0 %v687
  %v689 = vpop.xlane.xlu0 %688
  %v690 = vadd.f32 %v613, %v614
  %v691 = vadd.f32 %v690, %v615
  %v692 = vsel %vm655, %v616, 0.0
  %v693 = vadd.f32 %v691, %v692
  %694 = vadd.xlane.f32.xlu0 %v693
  %v695 = vpop.xlane.xlu0 %694
  %v696 = vadd.f32 %v617, %v618
  %v697 = vadd.f32 %v696, %v619
  %v698 = vsel %vm655, %v620, 0.0
  %v699 = vadd.f32 %v697, %v698
  %700 = vadd.xlane.f32.xlu0 %v699
  %v701 = vpop.xlane.xlu0 %700
  %v702 = vadd.f32 %v621, %v622
  %v703 = vadd.f32 %v702, %v623
  %v704 = vsel %vm655, %v624, 0.0
  %v705 = vadd.f32 %v703, %v704
  %706 = vadd.xlane.f32.xlu0 %v705
  %v707 = vpop.xlane.xlu0 %706
  %v708 = vadd.f32 %v625, %v626
  %v709 = vadd.f32 %v708, %v627
  %v710 = vsel %vm655, %v628, 0.0
  %v711 = vadd.f32 %v709, %v710
  %712 = vadd.xlane.f32.xlu0 %v711
  %v713 = vpop.xlane.xlu0 %712
  %v714 = vadd.f32 %v629, %v630
  %v715 = vadd.f32 %v714, %v631
  %v716 = vsel %vm655, %v632, 0.0
  %v717 = vadd.f32 %v715, %v716
  %718 = vadd.xlane.f32.xlu0 %v717
  %v719 = vpop.xlane.xlu0 %718
  %v720 = vadd.f32 %v633, %v634
  %v721 = vadd.f32 %v720, %v635
  %v722 = vsel %vm655, %v636, 0.0
  %v723 = vadd.f32 %v721, %v722
  %724 = vadd.xlane.f32.xlu0 %v723
  %v725 = vpop.xlane.xlu0 %724
  %v726 = vadd.f32 %v637, %v638
  %v727 = vadd.f32 %v726, %v639
  %v728 = vsel %vm655, %v640, 0.0
  %v729 = vadd.f32 %v727, %v728
  %730 = vadd.xlane.f32.xlu0 %v729
  %v731 = vpop.xlane.xlu0 %730
  %v732 = vadd.f32 %v641, %v642
  %v733 = vadd.f32 %v732, %v643
  %v734 = vsel %vm655, %v644, 0.0
  %v735 = vadd.f32 %v733, %v734
  %736 = vadd.xlane.f32.xlu0 %v735
  %v737 = vpop.xlane.xlu0 %736
  %v738 = vadd.f32 %v645, %v646
  %v739 = vadd.f32 %v738, %v647
  %v740 = vsel %vm655, %v648, 0.0
  %v741 = vadd.f32 %v739, %v740
  %742 = vadd.xlane.f32.xlu0 %v741
  %v743 = vpop.xlane.xlu0 %742
  %v744 = vadd.f32 %v649, %v650
  %v745 = vadd.f32 %v744, %v651
  %v746 = vsel %vm655, %v652, 0.0
  %v747 = vadd.f32 %v745, %v746
  %748 = vadd.xlane.f32.xlu0 %v747
  %v749 = vpop.xlane.xlu0 %748
  %vm750 = vcmask 7168
  %751 = vst.msk [vmem:[%s4] sm:$0xff] %vm750, %v659
  %752 = vst.msk [vmem:[%s4 + $0x8] sm:$0xff] %vm750, %v665
  %753 = vst.msk [vmem:[%s4 + $0x10] sm:$0xff] %vm750, %v671
  %754 = vst.msk [vmem:[%s4 + $0x18] sm:$0xff] %vm750, %v677
  %755 = vst.msk [vmem:[%s4 + $0x20] sm:$0xff] %vm750, %v683
  %756 = vst.msk [vmem:[%s4 + $0x28] sm:$0xff] %vm750, %v689
  %757 = vst.msk [vmem:[%s4 + $0x30] sm:$0xff] %vm750, %v695
  %758 = vst.msk [vmem:[%s4 + $0x38] sm:$0xff] %vm750, %v701
  %759 = vst.msk [vmem:[%s4 + $0x40] sm:$0xff] %vm750, %v707
  %760 = vst.msk [vmem:[%s4 + $0x48] sm:$0xff] %vm750, %v713
  %761 = vst.msk [vmem:[%s4 + $0x50] sm:$0xff] %vm750, %v719
  %762 = vst.msk [vmem:[%s4 + $0x58] sm:$0xff] %vm750, %v725
  %763 = vst.msk [vmem:[%s4 + $0x60] sm:$0xff] %vm750, %v731
  %764 = vst.msk [vmem:[%s4 + $0x68] sm:$0xff] %vm750, %v737
  %765 = vst.msk [vmem:[%s4 + $0x70] sm:$0xff] %vm750, %v743
  %766 = vst.msk [vmem:[%s4 + $0x78] sm:$0xff] %vm750, %v749
  // Predicated region
  $region14: #{tpu_custom_call.1} parent=0 // pred_check
    _
  $region15: #{tpu_custom_call.1} parent=0 // pred_check_branch
    %768 = sbr.rel (0) target = $region17
  $region16: #{tpu_custom_call.1} parent=0 // pred_region
    _
  $region17: #{tpu_custom_call.1} parent=0 // pred_fallthru
    _
  // Predicated region
  $region18: #{tpu_custom_call.1} parent=0 // pred_check
    _
  $region19: #{tpu_custom_call.1} parent=0 // pred_check_branch
    %770 = sbr.rel (0) target = $region21
  $region20: #{tpu_custom_call.1} parent=0 // pred_region
    _
  $region21: #{tpu_custom_call.1} parent=0 // pred_fallthru
    _
  // Predicated region
  $region22: #{tpu_custom_call.1} parent=0 // pred_check
    _
  $region23: #{tpu_custom_call.1} parent=0 // pred_check_branch
    %772 = sbr.rel (0) target = $region25
  $region24: #{tpu_custom_call.1} parent=0 // pred_region
    _
  $region25: #{tpu_custom_call.1} parent=0 // pred_fallthru
    _
  // Predicated region
  $region26: #{tpu_custom_call.1} parent=0 // pred_check
    _
  $region27: #{tpu_custom_call.1} parent=0 // pred_check_branch
    %774 = sbr.rel (0) target = $region29
  $region28: #{tpu_custom_call.1} parent=0 // pred_region
    _
  $region29: #{tpu_custom_call.1} parent=0 // pred_fallthru
    _

</llo_original>
